<compile_context>
chip_gen: v7x
topology: tpu7x:2x2x1
jax: 0.10.0
libtpu: 0.0.40
codegen_flags: <defaults>
</compile_context>

<pallas_src>
import functools

import jax
import jax.numpy as jnp
from jax import lax
from jax.experimental import pallas as pl
from jax.experimental.pallas import tpu as pltpu

_LANE = 128
_SUB = 8  # f32 sublane tile; accumulator is always an (8,128) f32 vreg


def _round_up(x, m):
    return ((x + m - 1) // m) * m


def _chip_config():
    """Chip-aware defaults: partial-split width, block size, bf16-sub support."""
    kind = ""
    try:
        kind = jax.devices()[0].device_kind.lower()
    except Exception:
        pass
    is_v7 = "v7" in kind
    # v5e and older have no bf16 VALU; keep the widen-first subtraction there.
    old_vpu = any(tag in kind for tag in ("v2", "v3", "v4", "v5"))
    return {
        "num_parts": 2 if is_v7 else 1,      # 2 TensorCores only on v7x
        "block_rows": 8192 if is_v7 else 4096,
        "bf16_sub": not old_vpu,
    }


def _min_sublanes(dtype):
    itemsize = jnp.dtype(dtype).itemsize
    return max(_SUB, 32 // max(itemsize, 1))   # 8 (f32), 16 (bf16), 32 (int8/fp8)


def _vmem_limit_bytes(in_bytes_per_step, out_bytes_resident):
    # Double-buffered inputs + resident output block(s) + generous slack.
    need = 2 * in_bytes_per_step + 2 * out_bytes_resident + (8 << 20)
    return int(max(need, 24 << 20))


def _grid_geometry(rows, block_rows, min_sub, num_parts_req):
    block_rows = max(min_sub, _round_up(block_rows, min_sub))
    block = min(block_rows, _round_up(rows, min_sub))
    n_tiles = pl.cdiv(rows, block)
    num_parts = num_parts_req if n_tiles >= num_parts_req else 1
    tiles_per_part = pl.cdiv(n_tiles, num_parts)
    return block, n_tiles, num_parts, tiles_per_part


# ---------------------------------------------------------------------------
# reduction='mean': partial sums of (pred - target)^2 into (8,128) accumulators
# ---------------------------------------------------------------------------
def _sum_sq_partial_kernel(pred_ref, tgt_ref, out_ref, *,
                           rows_total, block_rows, tiles_per_part,
                           widen_after_sub):
    p = pl.program_id(0)          # partial slot ("parallel" -> 2 TCs on v7x)
    k = pl.program_id(1)          # row-tile sweep ("arbitrary" reduction axis)

    @pl.when(k == 0)
    def _():
        out_ref[...] = jnp.zeros_like(out_ref)

    tile = p * tiles_per_part + k
    row0 = tile * block_rows

    def diff():
        if widen_after_sub:
            return (pred_ref[...] - tgt_ref[...]).astype(jnp.float32)
        return pred_ref[...].astype(jnp.float32) - tgt_ref[...].astype(jnp.float32)

    def accumulate(sq):
        # VPU-only partial reduction into a single (8,128) vreg held in the
        # resident output block.
        out_ref[...] += jnp.sum(
            sq.reshape(block_rows // _SUB, _SUB, _LANE), axis=0)[None]

    full = row0 + block_rows <= rows_total

    @pl.when(full)
    def _():
        d = diff()
        accumulate(d * d)

    # Ragged tail tile only: build the row mask off the hot path. Fully-OOB
    # duplicate tiles (odd tile count on the 2-way split) skip compute and
    # cost only their clamped DMA.
    @pl.when(jnp.logical_and(jnp.logical_not(full), row0 < rows_total))
    def _():
        d = diff()
        sq = d * d
        rid = row0 + lax.broadcasted_iota(jnp.int32, sq.shape, 0)
        accumulate(jnp.where(rid < rows_total, sq, 0.0))


# ---------------------------------------------------------------------------
# reduction='none': per-batch partial sums of sqrt((pred-target)^2 + c^2) - c
# ---------------------------------------------------------------------------
def _per_batch_huber_partial_kernel(pred_ref, tgt_ref, out_ref, *,
                                    rows_total, block_rows, tiles_per_part,
                                    c, widen_after_sub):
    p = pl.program_id(0)
    k = pl.program_id(1)

    @pl.when(k == 0)
    def _():
        out_ref[...] = jnp.zeros_like(out_ref)

    tile = p * tiles_per_part + k
    row0 = tile * block_rows
    c2 = jnp.float32(c * c)
    cf = jnp.float32(c)

    def diff():
        if widen_after_sub:
            return (pred_ref[...] - tgt_ref[...]).astype(jnp.float32)
        return pred_ref[...].astype(jnp.float32) - tgt_ref[...].astype(jnp.float32)

    def accumulate(v):
        bsz = v.shape[0]
        out_ref[...] += jnp.sum(
            v.reshape(bsz, block_rows // _SUB, _SUB, _LANE), axis=1)[None]

    full = row0 + block_rows <= rows_total

    @pl.when(full)
    def _():
        d = diff()
        accumulate(jnp.sqrt(d * d + c2) - cf)

    @pl.when(jnp.logical_and(jnp.logical_not(full), row0 < rows_total))
    def _():
        d = diff()
        v = jnp.sqrt(d * d + c2) - cf
        rid = row0 + lax.broadcasted_iota(jnp.int32, v.shape, 1)
        accumulate(jnp.where(rid < rows_total, v, 0.0))


# ---------------------------------------------------------------------------
# wrappers
# ---------------------------------------------------------------------------
def _pseudo_huber_mean(pred, target, c, block_rows, num_parts_req, min_sub,
                       widen_after_sub):
    n = pred.size
    p = pred.reshape(-1)
    t = target.reshape(-1)
    if n % _LANE != 0:
        # Rare fallback (typical (B,C,H,W) sizes are 128-divisible): a
        # lane-ragged total needs a 128-aligned 2-D view, which costs one pad
        # pass. Zero diffs contribute nothing to the sum of squares.
        pad = _LANE - n % _LANE
        p = jnp.pad(p, (0, pad))
        t = jnp.pad(t, (0, pad))
    rows = p.size // _LANE
    p2 = p.reshape(rows, _LANE)
    t2 = t.reshape(rows, _LANE)

    block, n_tiles, num_parts, tiles_per_part = _grid_geometry(
        rows, block_rows, min_sub, num_parts_req)

    kernel = functools.partial(
        _sum_sq_partial_kernel, rows_total=rows, block_rows=block,
        tiles_per_part=tiles_per_part, widen_after_sub=widen_after_sub)

    def in_map(p_, k):
        return (jnp.minimum(p_ * tiles_per_part + k, n_tiles - 1), 0)

    itemsize = jnp.dtype(pred.dtype).itemsize
    in_bytes_per_step = 2 * block * _LANE * itemsize
    out_bytes = num_parts * _SUB * _LANE * 4

    partials = pl.pallas_call(
        kernel,
        out_shape=jax.ShapeDtypeStruct((num_parts, _SUB, _LANE), jnp.float32),
        grid_spec=pltpu.PrefetchScalarGridSpec(
            num_scalar_prefetch=0,
            grid=(num_parts, tiles_per_part),
            in_specs=[pl.BlockSpec((block, _LANE), in_map),
                      pl.BlockSpec((block, _LANE), in_map)],
            out_specs=pl.BlockSpec((1, _SUB, _LANE), lambda p_, k: (p_, 0, 0)),
        ),
        compiler_params=pltpu.CompilerParams(
            dimension_semantics=("parallel", "arbitrary"),
            vmem_limit_bytes=_vmem_limit_bytes(in_bytes_per_step, out_bytes),
        ),
        cost_estimate=pl.CostEstimate(
            flops=3 * n, transcendentals=0,
            bytes_accessed=2 * n * itemsize + out_bytes),
    )(p2, t2)

    mse = jnp.sum(partials) / jnp.float32(n)
    return jnp.sqrt(mse + jnp.float32(c * c)) - jnp.float32(c)


def _pseudo_huber_none(pred, target, c, block_rows, num_parts_req, min_sub,
                       widen_after_sub):
    bsz = pred.shape[0]
    n_per_batch = pred.size // bsz
    p = pred.reshape(bsz, -1)
    t = target.reshape(bsz, -1)
    if n_per_batch % _LANE != 0:
        # Rare fallback; padded elements contribute sqrt(0 + c^2) - c == 0, so
        # dividing by the true per-batch count stays exact.
        pad = _LANE - n_per_batch % _LANE
        p = jnp.pad(p, ((0, 0), (0, pad)))
        t = jnp.pad(t, ((0, 0), (0, pad)))
    rows = p.shape[1] // _LANE
    p3 = p.reshape(bsz, rows, _LANE)
    t3 = t.reshape(bsz, rows, _LANE)

    # Keep ~block_rows*128 elements per block regardless of batch size.
    # TODO(synk): very large batch sizes (bsz >> block_rows) would need a batch
    # grid axis to stay inside scoped VMEM; not needed at these shapes.
    per_batch_rows = max(min_sub, _round_up(max(block_rows // bsz, 1), min_sub))
    block, n_tiles, num_parts, tiles_per_part = _grid_geometry(
        rows, per_batch_rows, min_sub, num_parts_req)

    kernel = functools.partial(
        _per_batch_huber_partial_kernel, rows_total=rows, block_rows=block,
        tiles_per_part=tiles_per_part, c=c, widen_after_sub=widen_after_sub)

    def in_map(p_, k):
        return (0, jnp.minimum(p_ * tiles_per_part + k, n_tiles - 1), 0)

    itemsize = jnp.dtype(pred.dtype).itemsize
    in_bytes_per_step = 2 * bsz * block * _LANE * itemsize
    out_bytes = num_parts * bsz * _SUB * _LANE * 4
    n_total = bsz * n_per_batch

    partials = pl.pallas_call(
        kernel,
        out_shape=jax.ShapeDtypeStruct((num_parts, bsz, _SUB, _LANE), jnp.float32),
        grid_spec=pltpu.PrefetchScalarGridSpec(
            num_scalar_prefetch=0,
            grid=(num_parts, tiles_per_part),
            in_specs=[pl.BlockSpec((bsz, block, _LANE), in_map),
                      pl.BlockSpec((bsz, block, _LANE), in_map)],
            out_specs=pl.BlockSpec((1, bsz, _SUB, _LANE),
                                   lambda p_, k: (p_, 0, 0, 0)),
        ),
        compiler_params=pltpu.CompilerParams(
            dimension_semantics=("parallel", "arbitrary"),
            vmem_limit_bytes=_vmem_limit_bytes(in_bytes_per_step, out_bytes),
        ),
        cost_estimate=pl.CostEstimate(
            flops=5 * n_total, transcendentals=n_total,
            bytes_accessed=2 * n_total * itemsize + out_bytes),
    )(p3, t3)

    return jnp.sum(partials, axis=(0, 2, 3)) / jnp.float32(n_per_batch)


def pseudo_huber_loss(pred, target, data_dim=3, reduction="mean",
                      block_rows=None):
    """Pallas implementation of PseudoHuberLoss.forward."""
    assert pred.shape == target.shape
    cfg = _chip_config()
    if block_rows is None:
        block_rows = cfg["block_rows"]
    c = 0.00054 * data_dim
    min_sub = _min_sublanes(pred.dtype)
    widen_after_sub = bool(cfg["bf16_sub"]
                           and pred.dtype == jnp.bfloat16
                           and target.dtype == jnp.bfloat16)
    if reduction == "mean":
        return _pseudo_huber_mean(pred, target, c, block_rows,
                                  cfg["num_parts"], min_sub, widen_after_sub)
    if reduction == "none":
        return _pseudo_huber_none(pred, target, c, block_rows,
                                  cfg["num_parts"], min_sub, widen_after_sub)
    raise ValueError(f"unsupported reduction: {reduction}")


def pseudo_huber_loss_with_lpips_forward(pred_flow, target_flow, *, pred_data,
                                         times, data, data_dim=3,
                                         lpips_loss=None, block_rows=None):
    """Pallas-backed PseudoHuberLossWithLPIPS.forward."""
    del pred_data, data  # consumed only by the LPIPS branch; see TODO below.
    huber = pseudo_huber_loss(pred_flow, target_flow, data_dim=data_dim,
                              reduction="none", block_rows=block_rows)      # (B,)
    # TODO(synk): LPIPSLoss (pretrained torchvision VGG16 feature-space MSE over
    # data / pred_data) has no self-contained Pallas equivalent; supply precomputed
    # per-batch values via `lpips_loss` if available, otherwise the term is dropped.
    t = times.reshape(-1).astype(jnp.float32)
    weighted = huber * (1.0 - t)
    if lpips_loss is not None:
        weighted = weighted + lpips_loss.reshape(-1).astype(jnp.float32) * (
            1.0 / jnp.maximum(t, 0.1))
    return jnp.mean(weighted)


# ---------------------------------------------------------------------------
# references (pure JAX)
# ---------------------------------------------------------------------------
def _reference_mean(pred, target, data_dim=3):
    c = 0.00054 * data_dim
    d = pred.astype(jnp.float32) - target.astype(jnp.float32)
    return jnp.sqrt(jnp.mean(d * d) + c * c) - c


def _reference_none(pred, target, data_dim=3):
    c = 0.00054 * data_dim
    d = pred.astype(jnp.float32) - target.astype(jnp.float32)
    per_elem = jnp.sqrt(d * d + c * c) - c
    return per_elem.reshape(pred.shape[0], -1).mean(axis=1)


if __name__ == "__main__":
    key = jax.random.PRNGKey(0)
    k1, k2, k3, k4, k5 = jax.random.split(key, 5)

    B, C, H, W = 2, 4, 16, 16
    pred_flow = jax.random.normal(k1, (B, C, H, W), dtype=jnp.float32)
    target_flow = jax.random.normal(k2, (B, C, H, W), dtype=jnp.float32)
    pred_data = jax.random.normal(k3, (B, C, H, W), dtype=jnp.float32)
    data = jax.random.normal(k4, (B, C, H, W), dtype=jnp.float32)
    times = jax.random.uniform(k5, (B,), dtype=jnp.float32, minval=0.05, maxval=1.0)

    # --- PseudoHuberLoss, reduction='mean' -----------------------------------
    lm = jax.block_until_ready(pseudo_huber_loss(pred_flow, target_flow, reduction="mean"))
    rm = _reference_mean(pred_flow, target_flow)
    assert jnp.allclose(lm, rm, atol=1e-5, rtol=1e-5), (lm, rm)

    # bf16 inputs streamed directly (no wrapper f32 cast); f32 accumulation;
    # subtraction runs in bf16 on bf16-VALU chips, hence the looser tolerance.
    lb = jax.block_until_ready(pseudo_huber_loss(pred_flow.astype(jnp.bfloat16),
                                                 target_flow.astype(jnp.bfloat16),
                                                 reduction="mean"))
    rb = _reference_mean(pred_flow.astype(jnp.bfloat16), target_flow.astype(jnp.bfloat16))
    assert jnp.allclose(lb, rb, atol=1e-3, rtol=1e-3), (lb, rb)

    # Ragged row count + multi-tile + (on v7x) two-partial split, tiny block.
    pr = jax.random.normal(k1, (2, 4, 20, 16), dtype=jnp.float32)
    tr = jax.random.normal(k2, (2, 4, 20, 16), dtype=jnp.float32)
    lr = jax.block_until_ready(pseudo_huber_loss(pr, tr, reduction="mean", block_rows=8))
    rr = _reference_mean(pr, tr)
    assert jnp.allclose(lr, rr, atol=1e-5, rtol=1e-5), (lr, rr)

    # --- PseudoHuberLoss, reduction='none' (path used by PseudoHuberLossWithLPIPS) ---
    ln = jax.block_until_ready(pseudo_huber_loss(pred_flow, target_flow, reduction="none"))
    rn = _reference_none(pred_flow, target_flow)
    assert jnp.allclose(ln, rn, atol=1e-5, rtol=1e-5), (ln, rn)

    lnr = jax.block_until_ready(pseudo_huber_loss(pr, tr, reduction="none", block_rows=8))
    rnr = _reference_none(pr, tr)
    assert jnp.allclose(lnr, rnr, atol=1e-5, rtol=1e-5), (lnr, rnr)

    # --- Full PseudoHuberLossWithLPIPS.forward (LPIPS term: see TODO above) ---
    total = jax.block_until_ready(pseudo_huber_loss_with_lpips_forward(
        pred_flow, target_flow, pred_data=pred_data, times=times, data=data))
    ref_total = jnp.mean(rn * (1.0 - times))
    assert jnp.allclose(total, ref_total, atol=1e-5, rtol=1e-5), (total, ref_total)

    print("KERNEL_OK")
</pallas_src>

<mosaic_0001>
module attributes {stable_mosaic.version = 11 : i64} {
  func.func @_sum_sq_partial_kernel(%arg0: i32, %arg1: i32, %arg2: memref<16x128xf32, #tpu.memory_space<vmem>>, %arg3: memref<16x128xf32, #tpu.memory_space<vmem>>, %arg4: memref<1x8x128xf32, #tpu.memory_space<vmem>>) attributes {dimension_semantics = [#tpu.dimension_semantics<parallel>, #tpu.dimension_semantics<arbitrary>], iteration_bounds = array<i64: 1, 1>, scalar_prefetch = 0 : i64, scratch_operands = 0 : i64, tpu.core_type = #tpu.core_type<tc>, window_params = [{transform_indices = @transform_0, window_bounds = array<i64: 16, 128>}, {transform_indices = @transform_1, window_bounds = array<i64: 16, 128>}, {transform_indices = @transform_2, window_bounds = array<i64: 1, 8, 128>}]} {
    %c0_i32 = arith.constant 0 : i32
    %0 = arith.cmpi eq, %arg1, %c0_i32 : i32
    %1 = arith.extui %0 : i1 to i32
    %c0_i32_0 = arith.constant 0 : i32
    %2 = arith.cmpi ne, %1, %c0_i32_0 : i32
    scf.if %2 {
      %cst = arith.constant 0.000000e+00 : f32
      %15 = vector.broadcast %cst : f32 to vector<1x8x128xf32>
      %c0 = arith.constant 0 : index
      %c0_6 = arith.constant 0 : index
      %c0_7 = arith.constant 0 : index
      %16 = vector.load %arg4[%c0, %c0_6, %c0_7] : memref<1x8x128xf32, #tpu.memory_space<vmem>>, vector<1x8x128xf32>
      tpu.vector_store %arg4[%c0, %c0_6, %c0_7], %15 {strides = array<i32>} : memref<1x8x128xf32, #tpu.memory_space<vmem>>, vector<1x8x128xf32>,
    } else {
    }
    %c1_i32 = arith.constant 1 : i32
    %3 = arith.muli %arg0, %c1_i32 : i32
    %4 = arith.addi %3, %arg1 : i32
    %c16_i32 = arith.constant 16 : i32
    %5 = arith.muli %4, %c16_i32 : i32
    %c16_i32_1 = arith.constant 16 : i32
    %6 = arith.addi %5, %c16_i32_1 : i32
    %c16_i32_2 = arith.constant 16 : i32
    %7 = arith.cmpi sle, %6, %c16_i32_2 : i32
    %8 = arith.extui %7 : i1 to i32
    %c0_i32_3 = arith.constant 0 : i32
    %9 = arith.cmpi ne, %8, %c0_i32_3 : i32
    scf.if %9 {
      %c0 = arith.constant 0 : index
      %c0_6 = arith.constant 0 : index
      %15 = vector.load %arg2[%c0, %c0_6] : memref<16x128xf32, #tpu.memory_space<vmem>>, vector<16x128xf32>
      %c0_7 = arith.constant 0 : index
      %c0_8 = arith.constant 0 : index
      %16 = vector.load %arg3[%c0_7, %c0_8] : memref<16x128xf32, #tpu.memory_space<vmem>>, vector<16x128xf32>
      %17 = arith.subf %15, %16 : vector<16x128xf32>
      %18 = arith.mulf %17, %17 : vector<16x128xf32>
      %c0_9 = arith.constant 0 : index
      %c0_10 = arith.constant 0 : index
      %c0_11 = arith.constant 0 : index
      %19 = vector.load %arg4[%c0_9, %c0_10, %c0_11] : memref<1x8x128xf32, #tpu.memory_space<vmem>>, vector<1x8x128xf32>
      %20 = vector.shape_cast %18 : vector<16x128xf32> to vector<2x8x128xf32>
      %cst = arith.constant dense<0.000000e+00> : vector<8x128xf32>
      %21 = vector.multi_reduction <add>, %20, %cst [0] : vector<2x8x128xf32> to vector<8x128xf32>
      %22 = vector.shape_cast %21 : vector<8x128xf32> to vector<1x8x128xf32>
      %23 = arith.addf %19, %22 : vector<1x8x128xf32>
      %c0_12 = arith.constant 0 : index
      %c0_13 = arith.constant 0 : index
      %c0_14 = arith.constant 0 : index
      %24 = vector.load %arg4[%c0_12, %c0_13, %c0_14] : memref<1x8x128xf32, #tpu.memory_space<vmem>>, vector<1x8x128xf32>
      tpu.vector_store %arg4[%c0_12, %c0_13, %c0_14], %23 {strides = array<i32>} : memref<1x8x128xf32, #tpu.memory_space<vmem>>, vector<1x8x128xf32>,
    } else {
    }
    %true = arith.constant true
    %10 = arith.xori %7, %true : i1
    %c16_i32_4 = arith.constant 16 : i32
    %11 = arith.cmpi slt, %5, %c16_i32_4 : i32
    %12 = arith.andi %10, %11 : i1
    %13 = arith.extui %12 : i1 to i32
    %c0_i32_5 = arith.constant 0 : i32
    %14 = arith.cmpi ne, %13, %c0_i32_5 : i32
    scf.if %14 {
      %c0 = arith.constant 0 : index
      %c0_6 = arith.constant 0 : index
      %15 = vector.load %arg2[%c0, %c0_6] : memref<16x128xf32, #tpu.memory_space<vmem>>, vector<16x128xf32>
      %c0_7 = arith.constant 0 : index
      %c0_8 = arith.constant 0 : index
      %16 = vector.load %arg3[%c0_7, %c0_8] : memref<16x128xf32, #tpu.memory_space<vmem>>, vector<16x128xf32>
      %17 = arith.subf %15, %16 : vector<16x128xf32>
      %18 = arith.mulf %17, %17 : vector<16x128xf32>
      %19 = tpu.iota {dimensions = array<i32: 0>} : vector<16x128xi32>
      %20 = vector.broadcast %5 : i32 to vector<16x128xi32>
      %21 = arith.addi %20, %19 : vector<16x128xi32>
      %c16_i32_9 = arith.constant 16 : i32
      %22 = vector.broadcast %c16_i32_9 : i32 to vector<16x128xi32>
      %23 = arith.cmpi slt, %21, %22 : vector<16x128xi32>
      %cst = arith.constant 0.000000e+00 : f32
      %24 = vector.broadcast %cst : f32 to vector<16x128xf32>
      %25 = arith.select %23, %18, %24 : vector<16x128xi1>, vector<16x128xf32>
      %c0_10 = arith.constant 0 : index
      %c0_11 = arith.constant 0 : index
      %c0_12 = arith.constant 0 : index
      %26 = vector.load %arg4[%c0_10, %c0_11, %c0_12] : memref<1x8x128xf32, #tpu.memory_space<vmem>>, vector<1x8x128xf32>
      %27 = vector.shape_cast %25 : vector<16x128xf32> to vector<2x8x128xf32>
      %cst_13 = arith.constant dense<0.000000e+00> : vector<8x128xf32>
      %28 = vector.multi_reduction <add>, %27, %cst_13 [0] : vector<2x8x128xf32> to vector<8x128xf32>
      %29 = vector.shape_cast %28 : vector<8x128xf32> to vector<1x8x128xf32>
      %30 = arith.addf %26, %29 : vector<1x8x128xf32>
      %c0_14 = arith.constant 0 : index
      %c0_15 = arith.constant 0 : index
      %c0_16 = arith.constant 0 : index
      %31 = vector.load %arg4[%c0_14, %c0_15, %c0_16] : memref<1x8x128xf32, #tpu.memory_space<vmem>>, vector<1x8x128xf32>
      tpu.vector_store %arg4[%c0_14, %c0_15, %c0_16], %30 {strides = array<i32>} : memref<1x8x128xf32, #tpu.memory_space<vmem>>, vector<1x8x128xf32>,
    } else {
    }
    return
  }
  func.func @transform_0(%arg0: i32, %arg1: i32) -> (i32, i32) {
    %c1_i32 = arith.constant 1 : i32
    %0 = arith.muli %arg0, %c1_i32 : i32
    %1 = arith.addi %0, %arg1 : i32
    %c0_i32 = arith.constant 0 : i32
    %2 = arith.minsi %1, %c0_i32 : i32
    %c0_i32_0 = arith.constant 0 : i32
    %c0_i32_1 = arith.constant 0 : i32
    return %2, %c0_i32_0 : i32, i32
  }
  func.func @transform_1(%arg0: i32, %arg1: i32) -> (i32, i32) {
    %c1_i32 = arith.constant 1 : i32
    %0 = arith.muli %arg0, %c1_i32 : i32
    %1 = arith.addi %0, %arg1 : i32
    %c0_i32 = arith.constant 0 : i32
    %2 = arith.minsi %1, %c0_i32 : i32
    %c0_i32_0 = arith.constant 0 : i32
    %c0_i32_1 = arith.constant 0 : i32
    return %2, %c0_i32_0 : i32, i32
  }
  func.func @transform_2(%arg0: i32, %arg1: i32) -> (i32, i32, i32) {
    %c0_i32 = arith.constant 0 : i32
    %c0_i32_0 = arith.constant 0 : i32
    %c0_i32_1 = arith.constant 0 : i32
    return %arg0, %c0_i32, %c0_i32_0 : i32, i32, i32
  }
}

</mosaic_0001>

<llo_original>
// kernel: tpu_custom_call.1
$region0: #{tpu_custom_call.1}
  #allocation0 [shape = 'u32[]', space=smem, size = 0x4, offset = 0x4, fixed_abs, tag = 'smem constant byte address 0x4 - core index']
  #allocation1 [shape = 'u32[144,128]{1,0:T(1,128)}', space=vmem, size = 0x12000, scoped, tag = 'internal scratch']
  %s0 = inlined_call_operand.hbm [shape: f32[16,128], index: 0, kind: input, shape index: {}]
  %s1 = inlined_call_operand.hbm [shape: f32[16,128], index: 1, kind: input, shape index: {}]
  %s2 = inlined_call_operand.hbm [shape: f32[1,8,128], index: 2, kind: output, shape index: {}]
  %s3 = sld [smem:[#allocation0]]
  $region38: #{tpu_custom_call.1} parent=0
    _
  %s5 = ssub.s32 1, %s3
  %s6 = scalar_select 0, %s5, %s3
  $region1: #{tpu_custom_call.1} parent=0
    #allocation2 [shape = 'u8[8192]{0}', space=vmem, size = 0x2000, scoped, tag = 'input window, operand 0, single buffered']
    #allocation3 [shape = 's32[1]{0}', space=sflag, size = 0x4, scoped, tag = 'scoped memory for tpu_custom_call.1']
    #allocation4 [shape = 's32[1]{0}', space=sflag, size = 0x4, scoped, tag = 'scoped memory for tpu_custom_call.1']
    #allocation5 [shape = 'u8[8192]{0}', space=vmem, size = 0x2000, scoped, tag = 'input window, operand 1, single buffered']
    #allocation6 [shape = 's32[1]{0}', space=sflag, size = 0x4, scoped, tag = 'scoped memory for tpu_custom_call.1']
    #allocation7 [shape = 'u8[4096]{0}', space=vmem, size = 0x1000, scoped, tag = 'output window, operand 0, single buffered']
    %7 = vsyncpa [#allocation3], 0
    %8 = vsyncpa [#allocation6], 0
    %9 = vsyncpa [#allocation4], 0
    // Predicated region
    $region2: #{tpu_custom_call.1} parent=1 // pred_check
      _
    $region3: #{tpu_custom_call.1} parent=1 // pred_check_branch
      %11 = sbr.rel (0) target = $region5
    $region4: #{tpu_custom_call.1} parent=1 // pred_region
      %s12 = sadd.s32 0, 0
      %p13 = scmp.lt.s32.totalorder %s12, 0
      %s14 = scalar_select %p13, %s12, 0
      %s15 = smul.u32 2, %s14
      %s17 = ssub.s32 256, 256
      %18 = vsyncadd [#allocation3], %s17
      %s19 = smul.addr %s15, 128
      %s20 = scalar_lea.hbm %s0, %s19
      %s21 = sshll.u32 [#allocation2], 4
      %s22 = int_to_ptr.vmem [resolvable:$true] %s21
      %27 = dma.hbm_to_vmem [thread:$0]  %s20, 256, %s22, [#allocation3], 128, 128, 8
    $region5: #{tpu_custom_call.1} parent=1 // pred_fallthru
      _
    // Predicated region
    $region6: #{tpu_custom_call.1} parent=1 // pred_check
      _
    $region7: #{tpu_custom_call.1} parent=1 // pred_check_branch
      %29 = sbr.rel (0) target = $region9
    $region8: #{tpu_custom_call.1} parent=1 // pred_region
      %s30 = sadd.s32 0, 0
      %p31 = scmp.lt.s32.totalorder %s30, 0
      %s32 = scalar_select %p31, %s30, 0
      %s33 = smul.u32 2, %s32
      %s35 = ssub.s32 256, 256
      %36 = vsyncadd [#allocation6], %s35
      %s37 = smul.addr %s33, 128
      %s38 = scalar_lea.hbm %s1, %s37
      %s39 = sshll.u32 [#allocation5], 4
      %s40 = int_to_ptr.vmem [resolvable:$true] %s39
      %45 = dma.hbm_to_vmem [thread:$0]  %s38, 256, %s40, [#allocation6], 128, 128, 8
    $region9: #{tpu_custom_call.1} parent=1 // pred_fallthru
      _
    // Predicated region
    $region10: #{tpu_custom_call.1} parent=1 // pred_check
      _
    $region11: #{tpu_custom_call.1} parent=1 // pred_check_branch
      %47 = sbr.rel (0) target = $region13
    $region12: #{tpu_custom_call.1} parent=1 // pred_region
      %48 = dma.done [#allocation3], 256
    $region13: #{tpu_custom_call.1} parent=1 // pred_fallthru
      _
    // Predicated region
    $region14: #{tpu_custom_call.1} parent=1 // pred_check
      _
    $region15: #{tpu_custom_call.1} parent=1 // pred_check_branch
      %50 = sbr.rel (0) target = $region17
    $region16: #{tpu_custom_call.1} parent=1 // pred_region
      %51 = dma.done [#allocation6], 256
    $region17: #{tpu_custom_call.1} parent=1 // pred_fallthru
      _
    %s52 = sadd.s32 0, 0
    %p53 = scmp.lt.s32.totalorder %s52, 0
    %s54 = scalar_select %p53, %s52, 0
    %s55 = smul.u32 2, %s54
    %s56 = sadd.s32 0, 0
    %p57 = scmp.lt.s32.totalorder %s56, 0
    %s58 = scalar_select %p57, %s56, 0
    %s59 = smul.u32 2, %s58
    %p60 = scmp.eq.s32.totalorder 0, 0
    // Predicated region
    $region18: #{tpu_custom_call.1} parent=1 // pred_check
      %p61 = pneg %p60
    $region19: #{tpu_custom_call.1} parent=1 // pred_check_branch
      %63 = sbr.rel (%p61) target = $region21
    $region20: #{tpu_custom_call.1} parent=1 // pred_region
      %64 = vst [vmem:[#allocation7] sm:$0xff] 0.0
    $region21: #{tpu_custom_call.1} parent=1 // pred_fallthru
      _
    %s65 = sadd.s32 0, 0
    %s66 = smul.u32 %s65, 16
    %s67 = sadd.s32 %s66, 16
    %p68 = scmp.le.s32.totalorder %s67, 16
    // Predicated region
    $region22: #{tpu_custom_call.1} parent=1 // pred_check
      %p69 = pneg %p68
    $region23: #{tpu_custom_call.1} parent=1 // pred_check_branch
      %71 = sbr.rel (%p69) target = $region25
    $region24: #{tpu_custom_call.1} parent=1 // pred_region
      %v72 = vld [vmem:[#allocation2] sm:$0xff]
      %v73 = vld [vmem:[#allocation2 + $0x8] sm:$0xff]
      %v74 = vld [vmem:[#allocation5] sm:$0xff]
      %v75 = vld [vmem:[#allocation5 + $0x8] sm:$0xff]
      %v76 = vsub.f32 %v72, %v74
      %v77 = vsub.f32 %v73, %v75
      %v78 = vmul.f32 %v76, %v76
      %v79 = vmul.f32 %v77, %v77
      %v80 = vld [vmem:[#allocation7] sm:$0xff]
      %v81 = vadd.f32 %v78, %v79
      %v82 = vadd.f32 %v80, %v81
      %83 = vst [vmem:[#allocation7] sm:$0xff] %v82
    $region25: #{tpu_custom_call.1} parent=1 // pred_fallthru
      _
    %p84 = scmp.gt.s32.totalorder %s67, 16
    %p85 = scmp.lt.s32.totalorder %s66, 16
    %p86 = pnand %p84, %p85
    %p87 = pneg %p86
    // Predicated region
    $region26: #{tpu_custom_call.1} parent=1 // pred_check
      _
    $region27: #{tpu_custom_call.1} parent=1 // pred_check_branch
      %89 = sbr.rel (%p86) target = $region29
    $region28: #{tpu_custom_call.1} parent=1 // pred_region
      %v90 = vld [vmem:[#allocation2] sm:$0xff]
      %v91 = vld [vmem:[#allocation2 + $0x8] sm:$0xff]
      %v92 = vld [vmem:[#allocation5] sm:$0xff]
      %v93 = vld [vmem:[#allocation5 + $0x8] sm:$0xff]
      %v94 = vsub.f32 %v90, %v92
      %v95 = vsub.f32 %v91, %v93
      %v96 = vmul.f32 %v94, %v94
      %v97 = vmul.f32 %v95, %v95
      %v98 = vlaneseq
      %v99 = vshrl.u32 %v98, 7
      %v100 = vadd.s32 %v99, 8
      %v101 = vstv %s66
      %v102 = vadd.s32 %v101, %v99
      %v103 = vadd.s32 %v101, %v100
      %vm104 = vcmp.lt.s32.totalorder %v102, 16
      %vm105 = vcmp.lt.s32.totalorder %v103, 16
      %v106 = vsel %vm104, %v96, 0.0
      %v107 = vsel %vm105, %v97, 0.0
      %v108 = vld [vmem:[#allocation7] sm:$0xff]
      %v109 = vadd.f32 %v106, %v107
      %v110 = vadd.f32 %v108, %v109
      %111 = vst [vmem:[#allocation7] sm:$0xff] %v110
    $region29: #{tpu_custom_call.1} parent=1 // pred_fallthru
      _
    // Predicated region
    $region30: #{tpu_custom_call.1} parent=1 // pred_check
      _
    $region31: #{tpu_custom_call.1} parent=1 // pred_check_branch
      %113 = sbr.rel (0) target = $region33
    $region32: #{tpu_custom_call.1} parent=1 // pred_region
      %s115 = ssub.s32 128, 128
      %116 = vsyncadd [#allocation4], %s115
      %s118 = sshll.u32 [#allocation7], 4
      %s119 = int_to_ptr.vmem [resolvable:$true] %s118
      %121 = dma.vmem_to_hbm [thread:$0]  %s119, 128, %s2, [#allocation4]
    $region33: #{tpu_custom_call.1} parent=1 // pred_fallthru
      _
    // Predicated region
    $region34: #{tpu_custom_call.1} parent=1 // pred_check
      _
    $region35: #{tpu_custom_call.1} parent=1 // pred_check_branch
      %123 = sbr.rel (0) target = $region37
    $region36: #{tpu_custom_call.1} parent=1 // pred_region
      %124 = dma.done [#allocation4], 128
    $region37: #{tpu_custom_call.1} parent=1 // pred_fallthru
      _
    %125 = vsyncpa [#allocation3], 1
    %126 = vsyncpa [#allocation6], 1
    %127 = vsyncpa [#allocation4], 1

</llo_original>
